<compile_context>
chip_gen: v7x
topology: tpu7x:2x2x1
jax: 0.10.0
libtpu: 0.0.40
codegen_flags: <defaults>
</compile_context>

<pallas_src>
import functools

import jax
import jax.numpy as jnp
from jax.experimental import pallas as pl
from jax.experimental.pallas import tpu as pltpu


def _round_up(x, m):
    return (x + m - 1) // m * m


def _vmem_limit_bytes():
    """Chip-aware scoped-VMEM limit: 64 MiB on 128 MiB parts (v5e/v6e),
    32 MiB where physical VMEM is 64 MiB/TC (v7x) or unknown."""
    try:
        cap = int(pltpu.get_tpu_info().vmem_capacity_bytes)
    except Exception:  # API unavailable / not on TPU -> be conservative (v7x-safe)
        cap = 64 * 1024 * 1024
    return 64 * 1024 * 1024 if cap >= 128 * 1024 * 1024 else 32 * 1024 * 1024


def _kd_pair_kernel(s1_ref, s2_ref, out_ref, *, inv_t, n_true, tile_n):
    """One (row_tile) step over a (tile_n, L) slab of one feature pair.

    out_ref: (8, 128) lane-dense full-vreg partial-result tile:
       row 0 = sum_{n,l} p * (log p - log q)   for this tile
       row 1 = sum_{n,l} |S2 - S1|             for this tile
    Normalization (1/N batchmean, 1/(N*L) L1 mean) is applied outside.
    """
    rid = pl.program_id(0)
    s1 = s1_ref[...].astype(jnp.float32)
    s2 = s2_ref[...].astype(jnp.float32)

    # Rows of a partial last tile (N not a multiple of tile_n, or N < tile_n)
    # hold undefined data; zero them so they contribute exactly 0 to both sums
    # (zero rows give log_p == log_q and |s2-s1| == 0).
    row = rid * tile_n + jax.lax.broadcasted_iota(jnp.int32, s1.shape, 0)
    valid = row < n_true
    s1 = jnp.where(valid, s1, 0.0)
    s2 = jnp.where(valid, s2, 0.0)

    # Multiply by trace-time constant 1/T (no full-width f32 divides).
    t1 = s1 * inv_t
    t2 = s2 * inv_t

    # softmax / log_softmax of S1/T along lanes via logsumexp (1 full-tile exp;
    # p reuses e1 via a per-row reciprocal instead of a 3rd exp).
    m1 = jnp.max(t1, axis=-1, keepdims=True)
    e1 = jnp.exp(t1 - m1)
    sum1 = jnp.sum(e1, axis=-1, keepdims=True)
    log_p = (t1 - m1) - jnp.log(sum1)
    p = e1 * pl.reciprocal(sum1, approx=False)

    # log_softmax of S2/T along lanes (1 full-tile exp).
    m2 = jnp.max(t2, axis=-1, keepdims=True)
    e2 = jnp.exp(t2 - m2)
    log_q = (t2 - m2) - jnp.log(jnp.sum(e2, axis=-1, keepdims=True))

    # F.kl_div(input=log_q, target=p) summed over the tile; L1 sum.
    kl_sum = jnp.sum(p * (log_p - log_q))
    l1_sum = jnp.sum(jnp.abs(s2 - s1))

    row_sel = jax.lax.broadcasted_iota(jnp.int32, (8, 128), 0)
    out_ref[...] = jnp.where(row_sel == 0, kl_sum,
                             jnp.where(row_sel == 1, l1_sum, jnp.float32(0.0)))


@functools.lru_cache(maxsize=None)
def _build_pair_call(n, l, dtype_name, inv_t, vmem_limit):
    """Builds (and caches) the pallas_call for one (N, L, dtype) feature pair."""
    dtype = jnp.dtype(dtype_name)
    itemsize = dtype.itemsize
    # Sublane-packing multiple for the streamed dtype (8 f32 / 16 bf16 / 32 i8).
    sub = max(8, 32 // itemsize)

    # Temporaries-aware VMEM budget for the row-tile size:
    #   inputs:      2 tensors x 2 pipeline buffers x tile_n x l_vmem x itemsize
    #   temporaries: ~6 live f32 tile-sized arrays inside the kernel body
    l_vmem = _round_up(l, 128)  # lanes are padded to 128 in VMEM
    per_row_bytes = 2 * 2 * l_vmem * itemsize + 6 * l_vmem * 4
    budget = max(vmem_limit - 4 * 1024 * 1024, 2 * 1024 * 1024)
    tile_n = max(sub, (budget // per_row_bytes) // sub * sub)
    tile_n = min(tile_n, _round_up(n, sub))
    # TODO(synk): for extremely wide L (sub * per_row_bytes > budget) add a
    # lane-chunk grid axis with an online/streamed logsumexp so per-step VMEM
    # stays bounded on v7x's 64 MiB VMEM.

    num_row_tiles = -(-n // tile_n)

    kernel = functools.partial(_kd_pair_kernel, inv_t=inv_t, n_true=n,
                               tile_n=tile_n)

    return pl.pallas_call(
        kernel,
        out_shape=jax.ShapeDtypeStruct((num_row_tiles, 8, 128), jnp.float32),
        grid_spec=pltpu.PrefetchScalarGridSpec(
            num_scalar_prefetch=0,
            grid=(num_row_tiles,),
            in_specs=[
                pl.BlockSpec((tile_n, l), lambda r: (r, 0)),
                pl.BlockSpec((tile_n, l), lambda r: (r, 0)),
            ],
            out_specs=pl.BlockSpec((None, 8, 128), lambda r: (r, 0, 0)),
        ),
        compiler_params=pltpu.CompilerParams(
            dimension_semantics=("parallel",),
            vmem_limit_bytes=vmem_limit,
        ),
    )


def kd_loss(S1_fea, S2_fea, loss_weight=1.0, temperature=0.15):
    """JAX/Pallas equivalent of KDLoss.forward.

    Args:
      S1_fea: list of (N, L) arrays (teacher features; treated as detached).
      S2_fea: list of (N, L) arrays (student features).
    Returns:
      (loss_weight * loss_KD_dis, loss_weight * loss_KD_abs) as f32 scalars.
    """
    num_pairs = len(S1_fea)
    assert num_pairs == len(S2_fea) and num_pairs > 0
    inv_t = float(1.0 / temperature)
    vmem_limit = _vmem_limit_bytes()

    loss_kd_dis = jnp.float32(0.0)
    loss_kd_abs = jnp.float32(0.0)
    for s1, s2 in zip(S1_fea, S2_fea):
        s1 = jnp.asarray(s1)
        s2 = jnp.asarray(s2)
        assert s1.ndim == 2 and s1.shape == s2.shape
        n, l = int(s1.shape[0]), int(s1.shape[1])
        dtype = jnp.result_type(s1.dtype, s2.dtype)

        call = _build_pair_call(n, l, jnp.dtype(dtype).name, inv_t, vmem_limit)
        partials = call(s1.astype(dtype), s2.astype(dtype))  # (tiles, 8, 128)

        kl_sum = jnp.sum(partials[:, 0, 0])
        l1_sum = jnp.sum(partials[:, 1, 0])
        loss_kd_dis = loss_kd_dis + kl_sum / jnp.float32(n)        # batchmean
        loss_kd_abs = loss_kd_abs + l1_sum / jnp.float32(n * l)    # L1 mean

    lw = jnp.float32(loss_weight)
    return lw * loss_kd_dis, lw * loss_kd_abs


def _kd_loss_ref(S1_fea, S2_fea, loss_weight=1.0, temperature=0.15):
    """Pure-JAX reference for validation (stable log_softmax form)."""
    dis = jnp.float32(0.0)
    ab = jnp.float32(0.0)
    for s1, s2 in zip(S1_fea, S2_fea):
        t1 = s1.astype(jnp.float32) / temperature
        t2 = s2.astype(jnp.float32) / temperature
        p = jax.nn.softmax(t1, axis=1)
        log_p = jax.nn.log_softmax(t1, axis=1)
        log_q = jax.nn.log_softmax(t2, axis=1)
        dis = dis + jnp.sum(p * (log_p - log_q)) / s1.shape[0]
        ab = ab + jnp.mean(jnp.abs(s2.astype(jnp.float32) - s1.astype(jnp.float32)))
    return loss_weight * dis, loss_weight * ab


if __name__ == "__main__":
    key = jax.random.PRNGKey(0)
    k1, k2, k3, k4, k5, k6 = jax.random.split(key, 6)

    # Small (N, L) feature pairs consistent with the module's forward:
    #   (4, 32)  : rows < 8 (exercises the in-kernel row mask), lanes < 128
    #   (4, 64)
    #   (6, 200) : non-multiple-of-128 lane width, non-multiple-of-8 rows
    S1_fea = [
        jax.random.normal(k1, (4, 32), dtype=jnp.float32),
        jax.random.normal(k2, (4, 64), dtype=jnp.float32),
        jax.random.normal(k3, (6, 200), dtype=jnp.float32),
    ]
    S2_fea = [
        jax.random.normal(k4, (4, 32), dtype=jnp.float32),
        jax.random.normal(k5, (4, 64), dtype=jnp.float32),
        jax.random.normal(k6, (6, 200), dtype=jnp.float32),
    ]

    out_dis, out_abs = kd_loss(S1_fea, S2_fea, loss_weight=1.0, temperature=0.15)
    out_dis = jax.block_until_ready(out_dis)
    out_abs = jax.block_until_ready(out_abs)

    ref_dis, ref_abs = _kd_loss_ref(S1_fea, S2_fea, 1.0, 0.15)
    assert jnp.allclose(out_dis, ref_dis, rtol=1e-4, atol=1e-4), (out_dis, ref_dis)
    assert jnp.allclose(out_abs, ref_abs, rtol=1e-4, atol=1e-4), (out_abs, ref_abs)

    print("KERNEL_OK")
</pallas_src>

<mosaic_0001>
module attributes {stable_mosaic.version = 11 : i64} {
  func.func @_kd_pair_kernel(%arg0: i32, %arg1: memref<8x32xf32, #tpu.memory_space<vmem>>, %arg2: memref<8x32xf32, #tpu.memory_space<vmem>>, %arg3: memref<1x8x128xf32, #tpu.memory_space<vmem>>) attributes {dimension_semantics = [#tpu.dimension_semantics<parallel>], iteration_bounds = array<i64: 1>, scalar_prefetch = 0 : i64, scratch_operands = 0 : i64, tpu.core_type = #tpu.core_type<tc>, window_params = [{transform_indices = @transform_0, window_bounds = array<i64: 8, 32>}, {transform_indices = @transform_1, window_bounds = array<i64: 8, 32>}, {transform_indices = @transform_2, window_bounds = array<i64: 1, 8, 128>}]} {
    %c0 = arith.constant 0 : index
    %c0_0 = arith.constant 0 : index
    %0 = vector.load %arg1[%c0, %c0_0] : memref<8x32xf32, #tpu.memory_space<vmem>>, vector<8x32xf32>
    %c0_1 = arith.constant 0 : index
    %c0_2 = arith.constant 0 : index
    %1 = vector.load %arg2[%c0_1, %c0_2] : memref<8x32xf32, #tpu.memory_space<vmem>>, vector<8x32xf32>
    %c8_i32 = arith.constant 8 : i32
    %2 = arith.muli %arg0, %c8_i32 : i32
    %3 = tpu.iota {dimensions = array<i32: 0>} : vector<8x32xi32>
    %4 = vector.broadcast %2 : i32 to vector<8x32xi32>
    %5 = arith.addi %4, %3 : vector<8x32xi32>
    %c4_i32 = arith.constant 4 : i32
    %6 = vector.broadcast %c4_i32 : i32 to vector<8x32xi32>
    %7 = arith.cmpi slt, %5, %6 : vector<8x32xi32>
    %cst = arith.constant 0.000000e+00 : f32
    %8 = vector.broadcast %cst : f32 to vector<8x32xf32>
    %9 = arith.select %7, %0, %8 : vector<8x32xi1>, vector<8x32xf32>
    %cst_3 = arith.constant 0.000000e+00 : f32
    %10 = vector.broadcast %cst_3 : f32 to vector<8x32xf32>
    %11 = arith.select %7, %1, %10 : vector<8x32xi1>, vector<8x32xf32>
    %cst_4 = arith.constant 6.66666651 : f32
    %12 = vector.broadcast %cst_4 : f32 to vector<8x32xf32>
    %13 = arith.mulf %9, %12 : vector<8x32xf32>
    %cst_5 = arith.constant 6.66666651 : f32
    %14 = vector.broadcast %cst_5 : f32 to vector<8x32xf32>
    %15 = arith.mulf %11, %14 : vector<8x32xf32>
    %cst_6 = arith.constant dense<0xFF800000> : vector<8xf32>
    %16 = vector.multi_reduction <maximumf>, %13, %cst_6 [1] : vector<8x32xf32> to vector<8xf32>
    %17 = vector.shape_cast %16 : vector<8xf32> to vector<8x1xf32>
    %18 = vector.broadcast %17 : vector<8x1xf32> to vector<8x32xf32>
    %19 = arith.subf %13, %18 : vector<8x32xf32>
    %20 = math.exp %19 : vector<8x32xf32>
    %cst_7 = arith.constant dense<0.000000e+00> : vector<8xf32>
    %21 = vector.multi_reduction <add>, %20, %cst_7 [1] : vector<8x32xf32> to vector<8xf32>
    %22 = vector.shape_cast %21 : vector<8xf32> to vector<8x1xf32>
    %23 = vector.broadcast %17 : vector<8x1xf32> to vector<8x32xf32>
    %24 = arith.subf %13, %23 : vector<8x32xf32>
    %25 = math.log %22 : vector<8x1xf32>
    %26 = vector.broadcast %25 : vector<8x1xf32> to vector<8x32xf32>
    %27 = arith.subf %24, %26 : vector<8x32xf32>
    %28 = tpu.reciprocal %22 : vector<8x1xf32> -> vector<8x1xf32>
    %29 = vector.broadcast %28 : vector<8x1xf32> to vector<8x32xf32>
    %30 = arith.mulf %20, %29 : vector<8x32xf32>
    %cst_8 = arith.constant dense<0xFF800000> : vector<8xf32>
    %31 = vector.multi_reduction <maximumf>, %15, %cst_8 [1] : vector<8x32xf32> to vector<8xf32>
    %32 = vector.shape_cast %31 : vector<8xf32> to vector<8x1xf32>
    %33 = vector.broadcast %32 : vector<8x1xf32> to vector<8x32xf32>
    %34 = arith.subf %15, %33 : vector<8x32xf32>
    %35 = math.exp %34 : vector<8x32xf32>
    %36 = vector.broadcast %32 : vector<8x1xf32> to vector<8x32xf32>
    %37 = arith.subf %15, %36 : vector<8x32xf32>
    %cst_9 = arith.constant dense<0.000000e+00> : vector<8xf32>
    %38 = vector.multi_reduction <add>, %35, %cst_9 [1] : vector<8x32xf32> to vector<8xf32>
    %39 = vector.shape_cast %38 : vector<8xf32> to vector<8x1xf32>
    %40 = math.log %39 : vector<8x1xf32>
    %41 = vector.broadcast %40 : vector<8x1xf32> to vector<8x32xf32>
    %42 = arith.subf %37, %41 : vector<8x32xf32>
    %43 = arith.subf %27, %42 : vector<8x32xf32>
    %44 = arith.mulf %30, %43 : vector<8x32xf32>
    %45 = vector.shape_cast %44 : vector<8x32xf32> to vector<1x8x32xf32>
    %cst_10 = arith.constant dense<0.000000e+00> : vector<1xf32>
    %46 = vector.multi_reduction <add>, %45, %cst_10 [1, 2] : vector<1x8x32xf32> to vector<1xf32>
    %47 = vector.shape_cast %46 : vector<1xf32> to vector<1x1x1xf32>
    %48 = vector.extract %47[0, 0, 0] : f32 from vector<1x1x1xf32>
    %49 = arith.subf %11, %9 : vector<8x32xf32>
    %50 = math.absf %49 : vector<8x32xf32>
    %51 = vector.shape_cast %50 : vector<8x32xf32> to vector<1x8x32xf32>
    %cst_11 = arith.constant dense<0.000000e+00> : vector<1xf32>
    %52 = vector.multi_reduction <add>, %51, %cst_11 [1, 2] : vector<1x8x32xf32> to vector<1xf32>
    %53 = vector.shape_cast %52 : vector<1xf32> to vector<1x1x1xf32>
    %54 = vector.extract %53[0, 0, 0] : f32 from vector<1x1x1xf32>
    %55 = tpu.iota {dimensions = array<i32: 0>} : vector<8x128xi32>
    %c0_i32 = arith.constant 0 : i32
    %56 = vector.broadcast %c0_i32 : i32 to vector<8x128xi32>
    %57 = arith.cmpi eq, %55, %56 : vector<8x128xi32>
    %c1_i32 = arith.constant 1 : i32
    %58 = vector.broadcast %c1_i32 : i32 to vector<8x128xi32>
    %59 = arith.cmpi eq, %55, %58 : vector<8x128xi32>
    %cst_12 = arith.constant 0.000000e+00 : f32
    %60 = vector.broadcast %54 : f32 to vector<8x128xf32>
    %61 = vector.broadcast %cst_12 : f32 to vector<8x128xf32>
    %62 = arith.select %59, %60, %61 : vector<8x128xi1>, vector<8x128xf32>
    %63 = vector.broadcast %48 : f32 to vector<8x128xf32>
    %64 = arith.select %57, %63, %62 : vector<8x128xi1>, vector<8x128xf32>
    %c0_13 = arith.constant 0 : index
    %c0_14 = arith.constant 0 : index
    %c0_15 = arith.constant 0 : index
    %65 = vector.load %arg3[%c0_13, %c0_14, %c0_15] : memref<1x8x128xf32, #tpu.memory_space<vmem>>, vector<1x8x128xf32>
    %66 = vector.shape_cast %65 : vector<1x8x128xf32> to vector<8x128xf32>
    %67 = vector.shape_cast %64 : vector<8x128xf32> to vector<1x8x128xf32>
    tpu.vector_store %arg3[%c0_13, %c0_14, %c0_15], %67 {strides = array<i32>} : memref<1x8x128xf32, #tpu.memory_space<vmem>>, vector<1x8x128xf32>,
    return
  }
  func.func @transform_0(%arg0: i32) -> (i32, i32) {
    %c0_i32 = arith.constant 0 : i32
    %c0_i32_0 = arith.constant 0 : i32
    return %arg0, %c0_i32 : i32, i32
  }
  func.func @transform_1(%arg0: i32) -> (i32, i32) {
    %c0_i32 = arith.constant 0 : i32
    %c0_i32_0 = arith.constant 0 : i32
    return %arg0, %c0_i32 : i32, i32
  }
  func.func @transform_2(%arg0: i32) -> (i32, i32, i32) {
    %c0_i32 = arith.constant 0 : i32
    %c0_i32_0 = arith.constant 0 : i32
    %c0_i32_1 = arith.constant 0 : i32
    return %arg0, %c0_i32, %c0_i32_0 : i32, i32, i32
  }
}

</mosaic_0001>

<llo_original>
// kernel: tpu_custom_call.1
$region0: #{tpu_custom_call.1}
  #allocation0 [shape = 'u32[]', space=smem, size = 0x4, offset = 0x4, fixed_abs, tag = 'smem constant byte address 0x4 - core index']
  #allocation1 [shape = 'u32[144,128]{1,0:T(1,128)}', space=vmem, size = 0x12000, scoped, tag = 'internal scratch']
  %s0 = inlined_call_operand.hbm [shape: f32[4,32], index: 0, kind: input, shape index: {}]
  %s1 = inlined_call_operand.hbm [shape: f32[4,32], index: 1, kind: input, shape index: {}]
  %s2 = inlined_call_operand.hbm [shape: f32[1,8,128], index: 2, kind: output, shape index: {}]
  %s3 = sld [smem:[#allocation0]]
  $region26: #{tpu_custom_call.1} parent=0
    _
  %s5 = ssub.s32 1, %s3
  %s6 = scalar_select 0, %s5, %s3
  $region1: #{tpu_custom_call.1} parent=0
    #allocation2 [shape = 'u8[4096]{0}', space=vmem, size = 0x1000, scoped, tag = 'input window, operand 0, single buffered']
    #allocation3 [shape = 's32[1]{0}', space=sflag, size = 0x4, scoped, tag = 'scoped memory for tpu_custom_call.1']
    #allocation4 [shape = 's32[1]{0}', space=sflag, size = 0x4, scoped, tag = 'scoped memory for tpu_custom_call.1']
    #allocation5 [shape = 'u8[4096]{0}', space=vmem, size = 0x1000, scoped, tag = 'input window, operand 1, single buffered']
    #allocation6 [shape = 's32[1]{0}', space=sflag, size = 0x4, scoped, tag = 'scoped memory for tpu_custom_call.1']
    #allocation7 [shape = 'u8[4096]{0}', space=vmem, size = 0x1000, scoped, tag = 'output window, operand 0, single buffered']
    %7 = vsyncpa [#allocation3], 0
    %8 = vsyncpa [#allocation6], 0
    %9 = vsyncpa [#allocation4], 0
    // Predicated region
    $region2: #{tpu_custom_call.1} parent=1 // pred_check
      _
    $region3: #{tpu_custom_call.1} parent=1 // pred_check_branch
      %11 = sbr.rel (0) target = $region5
    $region4: #{tpu_custom_call.1} parent=1 // pred_region
      %s13 = ssub.s32 128, 64
      %14 = vsyncadd [#allocation3], %s13
      %s15 = sshll.u32 [#allocation2], 4
      %s16 = int_to_ptr.vmem [resolvable:$true] %s15
      %21 = dma.hbm_to_vmem [thread:$0]  %s0, 64, %s16, [#allocation3], 64, 64, 4
    $region5: #{tpu_custom_call.1} parent=1 // pred_fallthru
      _
    // Predicated region
    $region6: #{tpu_custom_call.1} parent=1 // pred_check
      _
    $region7: #{tpu_custom_call.1} parent=1 // pred_check_branch
      %23 = sbr.rel (0) target = $region9
    $region8: #{tpu_custom_call.1} parent=1 // pred_region
      %s25 = ssub.s32 128, 64
      %26 = vsyncadd [#allocation6], %s25
      %s27 = sshll.u32 [#allocation5], 4
      %s28 = int_to_ptr.vmem [resolvable:$true] %s27
      %33 = dma.hbm_to_vmem [thread:$0]  %s1, 64, %s28, [#allocation6], 64, 64, 4
    $region9: #{tpu_custom_call.1} parent=1 // pred_fallthru
      _
    // Predicated region
    $region10: #{tpu_custom_call.1} parent=1 // pred_check
      _
    $region11: #{tpu_custom_call.1} parent=1 // pred_check_branch
      %35 = sbr.rel (0) target = $region13
    $region12: #{tpu_custom_call.1} parent=1 // pred_region
      %36 = dma.done [#allocation3], 128
    $region13: #{tpu_custom_call.1} parent=1 // pred_fallthru
      _
    // Predicated region
    $region14: #{tpu_custom_call.1} parent=1 // pred_check
      _
    $region15: #{tpu_custom_call.1} parent=1 // pred_check_branch
      %38 = sbr.rel (0) target = $region17
    $region16: #{tpu_custom_call.1} parent=1 // pred_region
      %39 = dma.done [#allocation6], 128
    $region17: #{tpu_custom_call.1} parent=1 // pred_fallthru
      _
    %v40 = vld [vmem:[#allocation2] sm:$0xff]
    %v41 = vld [vmem:[#allocation5] sm:$0xff]
    %s42 = smul.u32 0, 8
    %v43 = vlaneseq
    %v44 = vshrl.u32 %v43, 7
    %v45 = vstv %s42
    %v46 = vadd.s32 %v45, %v44
    %vm47 = vcmp.lt.s32.totalorder %v46, 4
    %v48 = vsel %vm47, %v40, 0.0
    %v49 = vsel %vm47, %v41, 0.0
    %v50 = vmul.f32 %v48, 6.6666665
    %v51 = vmul.f32 %v49, 6.6666665
    %vm52 = vcmask 261120
    %v53 = vsel %vm52, %v50, -inf
    %54 = vmax.xlane.f32.xlu0 %v53
    %v55 = vpop.xlane.xlu0 %54
    %v56 = vsub.f32 %v50, %v55
    %v57 = vmul.f32 %v56, 1.442695
    %v58 = vpow.pop %v57
    %v59 = vsel %vm52, %v58, 0.0
    %60 = vadd.xlane.f32.xlu0 %v59
    %v61 = vpop.xlane.xlu0 %60
    %v62 = vlog2.pop %v61
    %v63 = vmul.f32 %v62, 0.6931472
    %v64 = vsub.f32 %v56, %v63
    %v65 = vrcp.pop %v61
    %v66 = vmul.f32 %v58, %v65
    %v67 = vsel %vm52, %v51, -inf
    %68 = vmax.xlane.f32.xlu0 %v67
    %v69 = vpop.xlane.xlu0 %68
    %v70 = vsub.f32 %v51, %v69
    %v71 = vmul.f32 %v70, 1.442695
    %v72 = vpow.pop %v71
    %v73 = vsel %vm52, %v72, 0.0
    %74 = vadd.xlane.f32.xlu0 %v73
    %v75 = vpop.xlane.xlu0 %74
    %v76 = vlog2.pop %v75
    %v77 = vmul.f32 %v76, 0.6931472
    %v78 = vsub.f32 %v70, %v77
    %v79 = vsub.f32 %v64, %v78
    %v80 = vmul.f32 %v66, %v79
    %v81 = vsel %vm52, %v80, 0.0
    %82 = vadd.xlane.f32.xlu0 %v81
    %v83 = vpop.xlane.xlu0 %82
    %v84 = vrot.slane %v83, 4
    %v85 = vadd.f32 %v83, %v84
    %v86 = vrot.slane %v85, 2
    %v87 = vadd.f32 %v85, %v86
    %v88 = vrot.slane %v87, 1
    %v89 = vadd.f32 %v87, %v88
    %s90 = vtos %v89
    %v91 = vsub.f32 %v49, %v48
    %v92 = vand.u32 2147483647, %v91
    %v93 = vsel %vm52, %v92, 0.0
    %94 = vadd.xlane.f32.xlu0 %v93
    %v95 = vpop.xlane.xlu0 %94
    %v96 = vrot.slane %v95, 4
    %v97 = vadd.f32 %v95, %v96
    %v98 = vrot.slane %v97, 2
    %v99 = vadd.f32 %v97, %v98
    %v100 = vrot.slane %v99, 1
    %v101 = vadd.f32 %v99, %v100
    %s102 = vtos %v101
    %vm103 = vcmp.eq.s32.totalorder %v44, 0
    %vm104 = vcmp.eq.s32.totalorder %v44, 1
    %v105 = vstv %s102
    %v106 = vsel %vm104, %v105, 0.0
    %v107 = vstv %s90
    %v108 = vsel %vm103, %v107, %v106
    %109 = vst [vmem:[#allocation7] sm:$0xff] %v108
    // Predicated region
    $region18: #{tpu_custom_call.1} parent=1 // pred_check
      _
    $region19: #{tpu_custom_call.1} parent=1 // pred_check_branch
      %111 = sbr.rel (0) target = $region21
    $region20: #{tpu_custom_call.1} parent=1 // pred_region
      %s113 = ssub.s32 128, 128
      %114 = vsyncadd [#allocation4], %s113
      %s116 = sshll.u32 [#allocation7], 4
      %s117 = int_to_ptr.vmem [resolvable:$true] %s116
      %119 = dma.vmem_to_hbm [thread:$0]  %s117, 128, %s2, [#allocation4]
    $region21: #{tpu_custom_call.1} parent=1 // pred_fallthru
      _
    // Predicated region
    $region22: #{tpu_custom_call.1} parent=1 // pred_check
      _
    $region23: #{tpu_custom_call.1} parent=1 // pred_check_branch
      %121 = sbr.rel (0) target = $region25
    $region24: #{tpu_custom_call.1} parent=1 // pred_region
      %122 = dma.done [#allocation4], 128
    $region25: #{tpu_custom_call.1} parent=1 // pred_fallthru
      _
    %123 = vsyncpa [#allocation3], 1
    %124 = vsyncpa [#allocation6], 1
    %125 = vsyncpa [#allocation4], 1

</llo_original>
